<compile_context>
chip_gen: v7x
topology: tpu7x:2x2x1
jax: 0.10.0
libtpu: 0.0.40
codegen_flags: <defaults>
</compile_context>

<pallas_src>
import functools

import jax
import jax.numpy as jnp
from jax.experimental import pallas as pl
from jax.experimental.pallas import tpu as pltpu

_LANE = 128
_MIB = 1024 * 1024


# --------------------------- hardware config --------------------------------

def _vmem_capacity_bytes():
    """Physical VMEM bytes of the current TPU generation (conservative fallback)."""
    try:
        info = pltpu.get_tpu_info()
        cap = getattr(info, "vmem_capacity_bytes", None)
        if cap:
            return int(cap)
    except Exception:
        pass
    return 64 * _MIB  # v7x-sized conservative default; safe on every generation


def _hw_config():
    cap = _vmem_capacity_bytes()
    if cap >= 96 * _MIB:
        # v5e / v6e: 128 MiB VMEM -> big tiles, generous scoped limit.
        tile_rows = 16384                 # 16384 x 128 = 2M elems (8 MiB f32)
        tiled_vmem_limit = 64 * _MIB
    else:
        # v7x (64 MiB VMEM) or unknown: ~4 MiB tiles, keep headroom.
        tile_rows = 8192                  # 1M elems (4 MiB f32)
        tiled_vmem_limit = 40 * _MIB
    # Single-pass path budget: in + out (possibly double-buffered) + f32 temps
    # stays ~<= 0.75 * VMEM at elems == cap // 32.
    small_max_elems = cap // 32
    small_vmem_limit = max(32 * _MIB, cap - 8 * _MIB)
    return tile_rows, tiled_vmem_limit, small_max_elems, small_vmem_limit


# ------------------------------- kernels ------------------------------------

def _global_norm_kernel(x_ref, o_ref):
    # Whole (small) slab resident in VMEM: sum of squares, rsqrt, scale.
    x = x_ref[...].astype(jnp.float32)
    inv = jax.lax.rsqrt(jnp.sum(x * x, keepdims=True))      # (1, 1) f32
    o_ref[...] = (x * inv).astype(o_ref.dtype)


def _partial_sumsq_kernel(x_ref, o_ref, *, tile_rows, valid_rows, need_mask):
    # Per-tile (8, 128) f32 partial sum of squares: VPU-only adds across vregs,
    # no cross-lane/sublane XLU reduce and no scalar store in the hot loop.
    xf = x_ref[...].astype(jnp.float32)
    if need_mask:
        # Partial last tile: zero out rows past the true array extent
        # (out-of-bounds block rows read unspecified data).
        row = (jax.lax.broadcasted_iota(jnp.int32, xf.shape, 0)
               + pl.program_id(0) * tile_rows)
        xf = jnp.where(row < valid_rows, xf, 0.0)
    sq = xf * xf
    o_ref[...] = jnp.sum(sq.reshape(tile_rows // 8, 8, _LANE), axis=0)


def _scale_kernel(inv_ref, x_ref, o_ref):
    # Pure load-mul-store: inv comes from SMEM, stores are the saturating slot.
    inv = inv_ref[0]
    o_ref[...] = (x_ref[...].astype(jnp.float32) * inv).astype(o_ref.dtype)


# ------------------------------- wrappers ------------------------------------

def _to_2d(flat):
    """View the flat tensor as a lane-dense (rows, 128) slab.

    Zero-copy when numel % 128 == 0; otherwise pads with zeros (zeros do not
    change the Frobenius norm).
    """
    t = flat.shape[0]
    rows = -(-t // _LANE)
    t_pad = rows * _LANE
    padded = t_pad != t
    if padded:
        # TODO(synk): ragged (numel % 128 != 0) sizes still cost one padded
        # copy in and one slice out; 128-divisible sizes take the zero-copy
        # reshape path.
        flat = jnp.pad(flat, (0, t_pad - t))
    return flat.reshape(rows, _LANE), rows, padded


def _normalize_small(x2d, out_dtype, vmem_limit):
    # Single resident-in-VMEM block: one HBM read + one write (2N traffic).
    return pl.pallas_call(
        _global_norm_kernel,
        out_shape=jax.ShapeDtypeStruct(x2d.shape, out_dtype),
        grid_spec=pltpu.PrefetchScalarGridSpec(
            num_scalar_prefetch=0,
            grid=(1,),
            in_specs=[pl.BlockSpec(x2d.shape, lambda i: (0, 0))],
            out_specs=pl.BlockSpec(x2d.shape, lambda i: (0, 0)),
        ),
        compiler_params=pltpu.CompilerParams(
            dimension_semantics=("arbitrary",),
            vmem_limit_bytes=vmem_limit),
    )(x2d)


def _normalize_tiled(x2d, out_dtype, tile_rows, vmem_limit):
    rows = x2d.shape[0]

    # Sanitize / clamp the tile height (multiple of 8, not taller than the slab).
    tile_rows = max(8, (int(tile_rows) // 8) * 8)
    if rows >= 8:
        tile_rows = min(tile_rows, (rows // 8) * 8)
    num_tiles = -(-rows // tile_rows)
    need_mask = (rows % tile_rows) != 0

    # ---- Phase 1: per-tile (8,128) partial sums of squares (both TCs on v7x).
    sumsq_kernel = functools.partial(
        _partial_sumsq_kernel,
        tile_rows=tile_rows, valid_rows=rows, need_mask=need_mask)
    partials = pl.pallas_call(
        sumsq_kernel,
        out_shape=jax.ShapeDtypeStruct((num_tiles * 8, _LANE), jnp.float32),
        grid_spec=pltpu.PrefetchScalarGridSpec(
            num_scalar_prefetch=0,
            grid=(num_tiles,),
            in_specs=[pl.BlockSpec((tile_rows, _LANE), lambda i: (i, 0))],
            out_specs=pl.BlockSpec((8, _LANE), lambda i: (i, 0)),
        ),
        compiler_params=pltpu.CompilerParams(
            dimension_semantics=("parallel",),
            vmem_limit_bytes=vmem_limit),
    )(x2d)

    # Tiny wrapper-side tree reduce + rsqrt (a few KiB of f32).
    inv = jax.lax.rsqrt(jnp.sum(partials, dtype=jnp.float32))
    inv = inv.reshape(1).astype(jnp.float32)

    # ---- Phase 2: elementwise rescale; inv lives in SMEM, body is load-mul-store.
    out2d = pl.pallas_call(
        _scale_kernel,
        out_shape=jax.ShapeDtypeStruct(x2d.shape, out_dtype),
        grid_spec=pltpu.PrefetchScalarGridSpec(
            num_scalar_prefetch=0,
            grid=(num_tiles,),
            in_specs=[pl.BlockSpec(memory_space=pltpu.MemorySpace.SMEM),
                      pl.BlockSpec((tile_rows, _LANE), lambda i: (i, 0))],
            out_specs=pl.BlockSpec((tile_rows, _LANE), lambda i: (i, 0)),
        ),
        compiler_params=pltpu.CompilerParams(
            dimension_semantics=("parallel",),
            vmem_limit_bytes=vmem_limit),
    )(inv, x2d)
    return out2d


def normalization_forward(x, *, force_tiled=False, tile_rows=None):
    """X / ||X||_F over all elements (matches torch.linalg.norm(X) with no dim)."""
    orig_shape = x.shape
    flat = x.reshape(-1)
    t = flat.shape[0]
    if t == 0:
        return x

    cfg_tile_rows, tiled_vmem, small_max_elems, small_vmem = _hw_config()
    if tile_rows is None:
        tile_rows = cfg_tile_rows

    x2d, rows, padded = _to_2d(flat)

    use_small = (not force_tiled) and (t <= small_max_elems)
    if use_small or rows <= 8:
        out2d = _normalize_small(x2d, x.dtype, small_vmem)
    else:
        out2d = _normalize_tiled(x2d, x.dtype, tile_rows, tiled_vmem)

    out_flat = out2d.reshape(-1)
    if padded:
        out_flat = out_flat[:t]
    return out_flat.reshape(orig_shape)


# --------------------------------- test --------------------------------------

if __name__ == "__main__":
    key = jax.random.PRNGKey(0)

    # Small NCHW input consistent with a conv-style activation.
    x = jax.random.normal(key, (2, 4, 16, 16), dtype=jnp.float32)
    ref = x / jnp.sqrt(jnp.sum(x.astype(jnp.float32) ** 2))

    # Path 1: single resident-in-VMEM call (auto-selected for small slabs).
    out_small = jax.block_until_ready(normalization_forward(x))
    assert out_small.shape == x.shape and out_small.dtype == x.dtype
    assert jnp.allclose(out_small, ref, atol=1e-6, rtol=1e-5)

    # Path 2: force the tiled two-phase path; 2 tiles of (8, 128), no masking.
    out_tiled = jax.block_until_ready(
        normalization_forward(x, force_tiled=True, tile_rows=8))
    assert out_tiled.shape == x.shape and out_tiled.dtype == x.dtype
    assert jnp.allclose(out_tiled, ref, atol=1e-6, rtol=1e-5)

    # Path 3: tiled path with a partial last tile (rows=24, tile_rows=16) ->
    # exercises the in-kernel row mask (no padding, numel % 128 == 0).
    x2 = jax.random.normal(jax.random.fold_in(key, 1), (24, 128), dtype=jnp.float32)
    ref2 = x2 / jnp.sqrt(jnp.sum(x2 ** 2))
    out2 = jax.block_until_ready(
        normalization_forward(x2, force_tiled=True, tile_rows=16))
    assert jnp.allclose(out2, ref2, atol=1e-6, rtol=1e-5)

    # Path 4: ragged total size (numel % 128 != 0) -> padded fallback + mask.
    x3 = jax.random.normal(jax.random.fold_in(key, 2), (7, 300), dtype=jnp.float32)
    ref3 = x3 / jnp.sqrt(jnp.sum(x3 ** 2))
    out3 = jax.block_until_ready(
        normalization_forward(x3, force_tiled=True, tile_rows=8))
    assert jnp.allclose(out3, ref3, atol=1e-6, rtol=1e-5)

    print("KERNEL_OK")
</pallas_src>

<mosaic_0001>
module attributes {stable_mosaic.version = 11 : i64} {
  func.func @_global_norm_kernel(%arg0: i32, %arg1: memref<16x128xf32, #tpu.memory_space<vmem>>, %arg2: memref<16x128xf32, #tpu.memory_space<vmem>>) attributes {dimension_semantics = [#tpu.dimension_semantics<arbitrary>], iteration_bounds = array<i64: 1>, scalar_prefetch = 0 : i64, scratch_operands = 0 : i64, tpu.core_type = #tpu.core_type<tc>, window_params = [{pipeline_mode = #tpu.pipeline_mode<synchronous>, transform_indices = @transform_0, window_bounds = array<i64: 16, 128>}, {pipeline_mode = #tpu.pipeline_mode<synchronous>, transform_indices = @transform_1, window_bounds = array<i64: 16, 128>}]} {
    %c0 = arith.constant 0 : index
    %c0_0 = arith.constant 0 : index
    %0 = vector.load %arg1[%c0, %c0_0] : memref<16x128xf32, #tpu.memory_space<vmem>>, vector<16x128xf32>
    %1 = arith.mulf %0, %0 : vector<16x128xf32>
    %2 = vector.shape_cast %1 : vector<16x128xf32> to vector<1x16x128xf32>
    %cst = arith.constant dense<0.000000e+00> : vector<1xf32>
    %3 = vector.multi_reduction <add>, %2, %cst [1, 2] : vector<1x16x128xf32> to vector<1xf32>
    %4 = vector.shape_cast %3 : vector<1xf32> to vector<1x1x1xf32>
    %5 = vector.extract %4[0, 0, 0] : f32 from vector<1x1x1xf32>
    %6 = vector.broadcast %5 : f32 to vector<1x1xf32>
    %7 = math.rsqrt %6 : vector<1x1xf32>
    %8 = vector.broadcast %7 : vector<1x1xf32> to vector<16x128xf32>
    %9 = arith.mulf %0, %8 : vector<16x128xf32>
    %c0_1 = arith.constant 0 : index
    %c0_2 = arith.constant 0 : index
    %10 = vector.load %arg2[%c0_1, %c0_2] : memref<16x128xf32, #tpu.memory_space<vmem>>, vector<16x128xf32>
    tpu.vector_store %arg2[%c0_1, %c0_2], %9 {strides = array<i32>} : memref<16x128xf32, #tpu.memory_space<vmem>>, vector<16x128xf32>,
    return
  }
  func.func @transform_0(%arg0: i32) -> (i32, i32) {
    %c0_i32 = arith.constant 0 : i32
    %c0_i32_0 = arith.constant 0 : i32
    %c0_i32_1 = arith.constant 0 : i32
    return %c0_i32, %c0_i32_0 : i32, i32
  }
  func.func @transform_1(%arg0: i32) -> (i32, i32) {
    %c0_i32 = arith.constant 0 : i32
    %c0_i32_0 = arith.constant 0 : i32
    %c0_i32_1 = arith.constant 0 : i32
    return %c0_i32, %c0_i32_0 : i32, i32
  }
}

</mosaic_0001>

<llo_original>
// kernel: tpu_custom_call.1
$region0: #{tpu_custom_call.1}
  #allocation0 [shape = 'u32[]', space=smem, size = 0x4, offset = 0x4, fixed_abs, tag = 'smem constant byte address 0x4 - core index']
  #allocation1 [shape = 'u32[144,128]{1,0:T(1,128)}', space=vmem, size = 0x12000, scoped, tag = 'internal scratch']
  %s0 = inlined_call_operand.hbm [shape: f32[16,128], index: 0, kind: input, shape index: {}]
  %s1 = inlined_call_operand.hbm [shape: f32[16,128], index: 1, kind: output, shape index: {}]
  %s2 = sld [smem:[#allocation0]]
  $region18: #{tpu_custom_call.1} parent=0
    _
  %s4 = ssub.s32 1, %s2
  %s5 = scalar_select 0, %s4, %s2
  $region1: #{tpu_custom_call.1} parent=0
    #allocation2 [shape = 'u8[8192]{0}', space=vmem, size = 0x2000, scoped, tag = 'input window, operand 0, single buffered']
    #allocation3 [shape = 's32[1]{0}', space=sflag, size = 0x4, scoped, tag = 'scoped memory for tpu_custom_call.1']
    #allocation4 [shape = 's32[1]{0}', space=sflag, size = 0x4, scoped, tag = 'scoped memory for tpu_custom_call.1']
    #allocation5 [shape = 'u8[8192]{0}', space=vmem, size = 0x2000, scoped, tag = 'output window, operand 0, single buffered']
    %6 = vsyncpa [#allocation3], 0
    %7 = vsyncpa [#allocation4], 0
    // Predicated region
    $region2: #{tpu_custom_call.1} parent=1 // pred_check
      _
    $region3: #{tpu_custom_call.1} parent=1 // pred_check_branch
      %9 = sbr.rel (0) target = $region5
    $region4: #{tpu_custom_call.1} parent=1 // pred_region
      %s11 = ssub.s32 256, 256
      %12 = vsyncadd [#allocation3], %s11
      %s13 = sshll.u32 [#allocation2], 4
      %s14 = int_to_ptr.vmem [resolvable:$true] %s13
      %19 = dma.hbm_to_vmem [thread:$0]  %s0, 256, %s14, [#allocation3], 128, 128, 8
    $region5: #{tpu_custom_call.1} parent=1 // pred_fallthru
      _
    // Predicated region
    $region6: #{tpu_custom_call.1} parent=1 // pred_check
      _
    $region7: #{tpu_custom_call.1} parent=1 // pred_check_branch
      %21 = sbr.rel (0) target = $region9
    $region8: #{tpu_custom_call.1} parent=1 // pred_region
      %22 = dma.done [#allocation3], 256
    $region9: #{tpu_custom_call.1} parent=1 // pred_fallthru
      _
    %v23 = vld [vmem:[#allocation2] sm:$0xff]
    %v24 = vld [vmem:[#allocation2 + $0x8] sm:$0xff]
    %v25 = vmul.f32 %v23, %v23
    %v26 = vmul.f32 %v24, %v24
    %v27 = vadd.f32 %v25, %v26
    %28 = vadd.xlane.f32.xlu0 %v27
    %v29 = vpop.xlane.xlu0 %28
    %v30 = vrot.slane %v29, 4
    %v31 = vadd.f32 %v29, %v30
    %v32 = vrot.slane %v31, 2
    %v33 = vadd.f32 %v31, %v32
    %v34 = vrot.slane %v33, 1
    %v35 = vadd.f32 %v33, %v34
    %s36 = vtos %v35
    %v37 = vstv %s36
    %v38 = vrsqrt.pop %v37
    %v39 = vmul.f32 %v23, %v38
    %v40 = vmul.f32 %v24, %v38
    %41 = vst [vmem:[#allocation5] sm:$0xff] %v39
    %42 = vst [vmem:[#allocation5 + $0x8] sm:$0xff] %v40
    // Predicated region
    $region10: #{tpu_custom_call.1} parent=1 // pred_check
      _
    $region11: #{tpu_custom_call.1} parent=1 // pred_check_branch
      %44 = sbr.rel (0) target = $region13
    $region12: #{tpu_custom_call.1} parent=1 // pred_region
      %s46 = ssub.s32 256, 256
      %47 = vsyncadd [#allocation4], %s46
      %s48 = sshll.u32 [#allocation5], 4
      %s49 = int_to_ptr.vmem [resolvable:$true] %s48
      %54 = dma.vmem_to_hbm [thread:$0]  %s49, 256, %s1, [#allocation4], 128, 128, 8
    $region13: #{tpu_custom_call.1} parent=1 // pred_fallthru
      _
    // Predicated region
    $region14: #{tpu_custom_call.1} parent=1 // pred_check
      _
    $region15: #{tpu_custom_call.1} parent=1 // pred_check_branch
      %56 = sbr.rel (0) target = $region17
    $region16: #{tpu_custom_call.1} parent=1 // pred_region
      %57 = dma.done [#allocation4], 256
    $region17: #{tpu_custom_call.1} parent=1 // pred_fallthru
      _
    %58 = vsyncpa [#allocation3], 1
    %59 = vsyncpa [#allocation4], 1

</llo_original>
